<compile_context>
chip_gen: v7x
topology: tpu7x:2x2x1
jax: 0.10.0
libtpu: 0.0.40
codegen_flags: <defaults>
</compile_context>

<pallas_src>
import functools

import jax
import jax.numpy as jnp
from jax.experimental import pallas as pl
from jax.experimental.pallas import tpu as pltpu


def _softplus(x):
    # Numerically stable softplus using only ops with guaranteed Mosaic
    # lowering (max / abs / exp / log).
    return jnp.maximum(x, 0.0) + jnp.log(1.0 + jnp.exp(-jnp.abs(x)))


def _lstm_kernel(x_ref, p_ref, out_ref, *, seq_len, bpad, hidden, embed):
    """Fused LSTM recurrence + 2-class classifier head.

    x_ref  : (T*Bp, E)   time-major inputs, batch padded to Bp = 8
    p_ref  : (R, 4H)     packed parameter slab:
               rows [0, E)              W_ih^T           (gate order i,f,g,o)
               rows [E, E+H)            W_hh^T
               row   E+H                b_ih + b_hh
               row   E+H+8, lanes [0,H) w_out[1] - w_out[0]
               row   E+H+8, lane   H    b_out[1] - b_out[0]
               rows [E+H+16, +Bp)       lanes [0,H)=h0, lanes [H,2H)=c0
    out_ref: (Bp, 4H)    lanes [0,H)=h_n, [H,2H)=c_n, 2H=logp0, 2H+1=logp1
    """
    T, Bp, H, E = seq_len, bpad, hidden, embed
    r_whh = E
    r_bias = E + H
    r_head = r_bias + 8
    r_state = r_head + 8

    wih = p_ref[0:E, :]                          # (E, 4H)
    whh = p_ref[r_whh:r_whh + H, :]              # (H, 4H)
    bias = p_ref[r_bias:r_bias + 1, :]           # (1, 4H)

    # ---- Prologue: input projection for ALL timesteps, bias folded once ----
    xproj = (jnp.dot(x_ref[...], wih, preferred_element_type=jnp.float32)
             + bias)                             # (T*Bp, 4H)

    h = p_ref[r_state:r_state + Bp, 0:H]         # (Bp, H)
    c = p_ref[r_state:r_state + Bp, H:2 * H]     # (Bp, H)

    # ---- Serial recurrence (fully unrolled, 8-aligned static slices) ----
    for t in range(T):
        gates = (xproj[t * Bp:(t + 1) * Bp, :]
                 + jnp.dot(h, whh, preferred_element_type=jnp.float32))
        sig = jax.nn.sigmoid(gates)              # full 128 lanes, unmasked EUP
        tng = jnp.tanh(gates)                    # full 128 lanes, unmasked EUP
        # PyTorch gate order along 4H: [i, f, g, o]
        i_g = sig[:, 0 * H:1 * H]
        f_g = sig[:, 1 * H:2 * H]
        g_g = tng[:, 2 * H:3 * H]
        o_g = sig[:, 3 * H:4 * H]
        c = f_g * c + i_g * g_g
        h = o_g * jnp.tanh(c)

    # ---- Epilogue: Linear(H, 2) + log_softmax via softplus(l1 - l0) ----
    d_row = p_ref[r_head:r_head + 1, 0:H]        # (1, H) = w_out[1]-w_out[0]
    d_b = p_ref[r_head:r_head + 1, H:H + 1]      # (1, 1) = b_out[1]-b_out[0]
    delta = jnp.sum(h * d_row, axis=-1, keepdims=True) + d_b   # (Bp, 1)
    logp0 = -_softplus(delta)
    logp1 = -_softplus(-delta)

    # Single lane-dense output slab -> exactly one writeback DMA.
    out_ref[...] = jnp.zeros((Bp, 4 * H), jnp.float32)
    out_ref[:, 0:H] = h
    out_ref[:, H:2 * H] = c
    out_ref[:, 2 * H:2 * H + 1] = logp0
    out_ref[:, 2 * H + 1:2 * H + 2] = logp1


@jax.jit
def lstm_classifier_forward(inputs, h0, c0, params):
    """Pallas equivalent of Model.forward(inputs, hidden).

    inputs: (T, B, E) float32
    h0, c0: (1, B, H) float32
    returns: (logprobs (B, 2), (h_n (1, B, H), c_n (1, B, H)))
    """
    T, B, E = inputs.shape
    H = h0.shape[-1]
    Bp = 8                               # pad batch to one full sublane tile
    G = 4 * H                            # 128 lanes for H = 32
    assert B <= Bp

    # -- pad batch and flatten time-major inputs --
    x_pad = jnp.pad(inputs, ((0, 0), (0, Bp - B), (0, 0)))       # (T, Bp, E)
    x2d = x_pad.reshape(T * Bp, E)
    h0_p = jnp.pad(h0.reshape(B, H), ((0, Bp - B), (0, 0)))      # (Bp, H)
    c0_p = jnp.pad(c0.reshape(B, H), ((0, Bp - B), (0, 0)))      # (Bp, H)

    # -- pack all small operands into one lane-dense (R, 4H) parameter slab --
    r_bias = E + H
    r_head = r_bias + 8
    r_state = r_head + 8
    R = r_state + Bp
    slab = jnp.zeros((R, G), jnp.float32)
    slab = slab.at[0:E, :].set(params["w_ih"].T)                 # (E, 4H)
    slab = slab.at[E:E + H, :].set(params["w_hh"].T)             # (H, 4H)
    slab = slab.at[r_bias, :].set(params["b_ih"] + params["b_hh"])
    slab = slab.at[r_head, 0:H].set(params["w_out"][1] - params["w_out"][0])
    slab = slab.at[r_head, H].set(params["b_out"][1] - params["b_out"][0])
    slab = slab.at[r_state:r_state + Bp, 0:H].set(h0_p)
    slab = slab.at[r_state:r_state + Bp, H:2 * H].set(c0_p)

    vmem = pl.BlockSpec(memory_space=pltpu.MemorySpace.VMEM)
    out = pl.pallas_call(
        functools.partial(_lstm_kernel, seq_len=T, bpad=Bp, hidden=H, embed=E),
        out_shape=jax.ShapeDtypeStruct((Bp, G), jnp.float32),
        in_specs=[vmem, vmem],
        out_specs=vmem,
    )(x2d, slab)

    # Slice real batch rows back out of the padded output slab.
    logp = out[:B, 2 * H:2 * H + 2]
    h_n = out[:B, 0:H].reshape(1, B, H)
    c_n = out[:B, H:2 * H].reshape(1, B, H)
    return logp, (h_n, c_n)


def _reference_forward(inputs, h0, c0, params):
    """Pure-JAX reference mirroring PyTorch nn.LSTM + Linear + log_softmax."""
    w_ih, w_hh = params["w_ih"], params["w_hh"]
    b = params["b_ih"] + params["b_hh"]
    H = h0.shape[-1]
    B = inputs.shape[1]

    def step(carry, x_t):
        h, c = carry
        gates = x_t @ w_ih.T + h @ w_hh.T + b
        i = jax.nn.sigmoid(gates[:, 0 * H:1 * H])
        f = jax.nn.sigmoid(gates[:, 1 * H:2 * H])
        g = jnp.tanh(gates[:, 2 * H:3 * H])
        o = jax.nn.sigmoid(gates[:, 3 * H:4 * H])
        c_new = f * c + i * g
        h_new = o * jnp.tanh(c_new)
        return (h_new, c_new), h_new

    (h_n, c_n), hs = jax.lax.scan(step, (h0.reshape(B, H), c0.reshape(B, H)),
                                  inputs)
    logits = hs[-1] @ params["w_out"].T + params["b_out"]
    logp = jax.nn.log_softmax(logits, axis=1)
    return logp, (h_n[None], c_n[None])


if __name__ == "__main__":
    T, B, E, H = 8, 2, 32, 32   # seq=8, batch=2, embedding_dim=32, hidden_dim=32

    key = jax.random.PRNGKey(0)
    ks = jax.random.split(key, 8)
    bound = 1.0 / jnp.sqrt(H)   # PyTorch LSTM/Linear default init range

    params = {
        "w_ih": jax.random.uniform(ks[0], (4 * H, E), jnp.float32, -bound, bound),
        "w_hh": jax.random.uniform(ks[1], (4 * H, H), jnp.float32, -bound, bound),
        "b_ih": jax.random.uniform(ks[2], (4 * H,), jnp.float32, -bound, bound),
        "b_hh": jax.random.uniform(ks[3], (4 * H,), jnp.float32, -bound, bound),
        "w_out": jax.random.uniform(ks[4], (2, H), jnp.float32, -bound, bound),
        "b_out": jax.random.uniform(ks[5], (2,), jnp.float32, -bound, bound),
    }

    inputs = jax.random.normal(ks[6], (T, B, E), jnp.float32)
    # Model.init_hidden() gives zeros of shape (1, 1, H); batch-broadcast to B.
    h0 = jnp.zeros((1, B, H), jnp.float32)
    c0 = jnp.zeros((1, B, H), jnp.float32)

    logp, (h_n, c_n) = lstm_classifier_forward(inputs, h0, c0, params)
    jax.block_until_ready((logp, h_n, c_n))

    ref_logp, (ref_h, ref_c) = _reference_forward(inputs, h0, c0, params)
    assert jnp.allclose(logp, ref_logp, atol=1e-5, rtol=1e-5)
    assert jnp.allclose(h_n, ref_h, atol=1e-5, rtol=1e-5)
    assert jnp.allclose(c_n, ref_c, atol=1e-5, rtol=1e-5)

    print("KERNEL_OK")
</pallas_src>

<mosaic_0001>
module attributes {stable_mosaic.version = 11 : i64} {
  func.func @_lstm_kernel(%arg0: memref<64x32xf32, #tpu.memory_space<vmem>>, %arg1: memref<88x128xf32, #tpu.memory_space<vmem>>, %arg2: memref<8x128xf32, #tpu.memory_space<vmem>>) attributes {dimension_semantics = [], scalar_prefetch = 0 : i64, scratch_operands = 0 : i64, tpu.core_type = #tpu.core_type<tc>} {
    %c0 = arith.constant 0 : index
    %c0_0 = arith.constant 0 : index
    %0 = vector.load %arg1[%c0, %c0_0] : memref<88x128xf32, #tpu.memory_space<vmem>>, vector<32x128xf32>
    %c32 = arith.constant 32 : index
    %c0_1 = arith.constant 0 : index
    %1 = vector.load %arg1[%c32, %c0_1] : memref<88x128xf32, #tpu.memory_space<vmem>>, vector<32x128xf32>
    %c64 = arith.constant 64 : index
    %c0_2 = arith.constant 0 : index
    %2 = vector.load %arg1[%c64, %c0_2] : memref<88x128xf32, #tpu.memory_space<vmem>>, vector<1x128xf32>
    %c0_3 = arith.constant 0 : index
    %c0_4 = arith.constant 0 : index
    %3 = vector.load %arg0[%c0_3, %c0_4] : memref<64x32xf32, #tpu.memory_space<vmem>>, vector<64x32xf32>
    %cst = arith.constant dense<0.000000e+00> : vector<64x128xf32>
    %4 = tpu.matmul %3, %0, %cst {dimension_numbers = #tpu.dot_dimension_numbers<[1], [0], [0], [1], [0, 0, 1, 1], [], []>} : vector<64x32xf32>, vector<32x128xf32>, vector<64x128xf32> -> vector<64x128xf32>
    %5 = vector.broadcast %2 : vector<1x128xf32> to vector<64x128xf32>
    %6 = arith.addf %4, %5 : vector<64x128xf32>
    %c80 = arith.constant 80 : index
    %c0_5 = arith.constant 0 : index
    %7 = vector.load %arg1[%c80, %c0_5] : memref<88x128xf32, #tpu.memory_space<vmem>>, vector<8x32xf32>
    %c80_6 = arith.constant 80 : index
    %c32_7 = arith.constant 32 : index
    %8 = vector.load %arg1[%c80_6, %c32_7] : memref<88x128xf32, #tpu.memory_space<vmem>>, vector<8x32xf32>
    %9 = vector.extract_strided_slice %6 {offsets = [0, 0], sizes = [8, 128], strides = [1, 1]} : vector<64x128xf32> to vector<8x128xf32>
    %cst_8 = arith.constant dense<0.000000e+00> : vector<8x128xf32>
    %10 = tpu.matmul %7, %1, %cst_8 {dimension_numbers = #tpu.dot_dimension_numbers<[1], [0], [0], [1], [0, 0, 1, 1], [], []>} : vector<8x32xf32>, vector<32x128xf32>, vector<8x128xf32> -> vector<8x128xf32>
    %11 = arith.addf %9, %10 : vector<8x128xf32>
    %12 = arith.negf %11 : vector<8x128xf32>
    %13 = math.exp %12 : vector<8x128xf32>
    %cst_9 = arith.constant 1.000000e+00 : f32
    %14 = vector.broadcast %cst_9 : f32 to vector<8x128xf32>
    %15 = arith.addf %14, %13 : vector<8x128xf32>
    %16 = arith.divf %14, %15 : vector<8x128xf32>
    %17 = math.tanh %11 : vector<8x128xf32>
    %18 = vector.extract_strided_slice %16 {offsets = [0, 0], sizes = [8, 32], strides = [1, 1]} : vector<8x128xf32> to vector<8x32xf32>
    %19 = vector.extract_strided_slice %16 {offsets = [0, 32], sizes = [8, 32], strides = [1, 1]} : vector<8x128xf32> to vector<8x32xf32>
    %20 = vector.extract_strided_slice %17 {offsets = [0, 64], sizes = [8, 32], strides = [1, 1]} : vector<8x128xf32> to vector<8x32xf32>
    %21 = vector.extract_strided_slice %16 {offsets = [0, 96], sizes = [8, 32], strides = [1, 1]} : vector<8x128xf32> to vector<8x32xf32>
    %22 = arith.mulf %19, %8 : vector<8x32xf32>
    %23 = arith.mulf %18, %20 : vector<8x32xf32>
    %24 = arith.addf %22, %23 : vector<8x32xf32>
    %25 = math.tanh %24 : vector<8x32xf32>
    %26 = arith.mulf %21, %25 : vector<8x32xf32>
    %27 = vector.extract_strided_slice %6 {offsets = [8, 0], sizes = [8, 128], strides = [1, 1]} : vector<64x128xf32> to vector<8x128xf32>
    %cst_10 = arith.constant dense<0.000000e+00> : vector<8x128xf32>
    %28 = tpu.matmul %26, %1, %cst_10 {dimension_numbers = #tpu.dot_dimension_numbers<[1], [0], [0], [1], [0, 0, 1, 1], [], []>} : vector<8x32xf32>, vector<32x128xf32>, vector<8x128xf32> -> vector<8x128xf32>
    %29 = arith.addf %27, %28 : vector<8x128xf32>
    %30 = arith.negf %29 : vector<8x128xf32>
    %31 = math.exp %30 : vector<8x128xf32>
    %cst_11 = arith.constant 1.000000e+00 : f32
    %32 = vector.broadcast %cst_11 : f32 to vector<8x128xf32>
    %33 = arith.addf %32, %31 : vector<8x128xf32>
    %34 = arith.divf %32, %33 : vector<8x128xf32>
    %35 = math.tanh %29 : vector<8x128xf32>
    %36 = vector.extract_strided_slice %34 {offsets = [0, 0], sizes = [8, 32], strides = [1, 1]} : vector<8x128xf32> to vector<8x32xf32>
    %37 = vector.extract_strided_slice %34 {offsets = [0, 32], sizes = [8, 32], strides = [1, 1]} : vector<8x128xf32> to vector<8x32xf32>
    %38 = vector.extract_strided_slice %35 {offsets = [0, 64], sizes = [8, 32], strides = [1, 1]} : vector<8x128xf32> to vector<8x32xf32>
    %39 = vector.extract_strided_slice %34 {offsets = [0, 96], sizes = [8, 32], strides = [1, 1]} : vector<8x128xf32> to vector<8x32xf32>
    %40 = arith.mulf %37, %24 : vector<8x32xf32>
    %41 = arith.mulf %36, %38 : vector<8x32xf32>
    %42 = arith.addf %40, %41 : vector<8x32xf32>
    %43 = math.tanh %42 : vector<8x32xf32>
    %44 = arith.mulf %39, %43 : vector<8x32xf32>
    %45 = vector.extract_strided_slice %6 {offsets = [16, 0], sizes = [8, 128], strides = [1, 1]} : vector<64x128xf32> to vector<8x128xf32>
    %cst_12 = arith.constant dense<0.000000e+00> : vector<8x128xf32>
    %46 = tpu.matmul %44, %1, %cst_12 {dimension_numbers = #tpu.dot_dimension_numbers<[1], [0], [0], [1], [0, 0, 1, 1], [], []>} : vector<8x32xf32>, vector<32x128xf32>, vector<8x128xf32> -> vector<8x128xf32>
    %47 = arith.addf %45, %46 : vector<8x128xf32>
    %48 = arith.negf %47 : vector<8x128xf32>
    %49 = math.exp %48 : vector<8x128xf32>
    %cst_13 = arith.constant 1.000000e+00 : f32
    %50 = vector.broadcast %cst_13 : f32 to vector<8x128xf32>
    %51 = arith.addf %50, %49 : vector<8x128xf32>
    %52 = arith.divf %50, %51 : vector<8x128xf32>
    %53 = math.tanh %47 : vector<8x128xf32>
    %54 = vector.extract_strided_slice %52 {offsets = [0, 0], sizes = [8, 32], strides = [1, 1]} : vector<8x128xf32> to vector<8x32xf32>
    %55 = vector.extract_strided_slice %52 {offsets = [0, 32], sizes = [8, 32], strides = [1, 1]} : vector<8x128xf32> to vector<8x32xf32>
    %56 = vector.extract_strided_slice %53 {offsets = [0, 64], sizes = [8, 32], strides = [1, 1]} : vector<8x128xf32> to vector<8x32xf32>
    %57 = vector.extract_strided_slice %52 {offsets = [0, 96], sizes = [8, 32], strides = [1, 1]} : vector<8x128xf32> to vector<8x32xf32>
    %58 = arith.mulf %55, %42 : vector<8x32xf32>
    %59 = arith.mulf %54, %56 : vector<8x32xf32>
    %60 = arith.addf %58, %59 : vector<8x32xf32>
    %61 = math.tanh %60 : vector<8x32xf32>
    %62 = arith.mulf %57, %61 : vector<8x32xf32>
    %63 = vector.extract_strided_slice %6 {offsets = [24, 0], sizes = [8, 128], strides = [1, 1]} : vector<64x128xf32> to vector<8x128xf32>
    %cst_14 = arith.constant dense<0.000000e+00> : vector<8x128xf32>
    %64 = tpu.matmul %62, %1, %cst_14 {dimension_numbers = #tpu.dot_dimension_numbers<[1], [0], [0], [1], [0, 0, 1, 1], [], []>} : vector<8x32xf32>, vector<32x128xf32>, vector<8x128xf32> -> vector<8x128xf32>
    %65 = arith.addf %63, %64 : vector<8x128xf32>
    %66 = arith.negf %65 : vector<8x128xf32>
    %67 = math.exp %66 : vector<8x128xf32>
    %cst_15 = arith.constant 1.000000e+00 : f32
    %68 = vector.broadcast %cst_15 : f32 to vector<8x128xf32>
    %69 = arith.addf %68, %67 : vector<8x128xf32>
    %70 = arith.divf %68, %69 : vector<8x128xf32>
    %71 = math.tanh %65 : vector<8x128xf32>
    %72 = vector.extract_strided_slice %70 {offsets = [0, 0], sizes = [8, 32], strides = [1, 1]} : vector<8x128xf32> to vector<8x32xf32>
    %73 = vector.extract_strided_slice %70 {offsets = [0, 32], sizes = [8, 32], strides = [1, 1]} : vector<8x128xf32> to vector<8x32xf32>
    %74 = vector.extract_strided_slice %71 {offsets = [0, 64], sizes = [8, 32], strides = [1, 1]} : vector<8x128xf32> to vector<8x32xf32>
    %75 = vector.extract_strided_slice %70 {offsets = [0, 96], sizes = [8, 32], strides = [1, 1]} : vector<8x128xf32> to vector<8x32xf32>
    %76 = arith.mulf %73, %60 : vector<8x32xf32>
    %77 = arith.mulf %72, %74 : vector<8x32xf32>
    %78 = arith.addf %76, %77 : vector<8x32xf32>
    %79 = math.tanh %78 : vector<8x32xf32>
    %80 = arith.mulf %75, %79 : vector<8x32xf32>
    %81 = vector.extract_strided_slice %6 {offsets = [32, 0], sizes = [8, 128], strides = [1, 1]} : vector<64x128xf32> to vector<8x128xf32>
    %cst_16 = arith.constant dense<0.000000e+00> : vector<8x128xf32>
    %82 = tpu.matmul %80, %1, %cst_16 {dimension_numbers = #tpu.dot_dimension_numbers<[1], [0], [0], [1], [0, 0, 1, 1], [], []>} : vector<8x32xf32>, vector<32x128xf32>, vector<8x128xf32> -> vector<8x128xf32>
    %83 = arith.addf %81, %82 : vector<8x128xf32>
    %84 = arith.negf %83 : vector<8x128xf32>
    %85 = math.exp %84 : vector<8x128xf32>
    %cst_17 = arith.constant 1.000000e+00 : f32
    %86 = vector.broadcast %cst_17 : f32 to vector<8x128xf32>
    %87 = arith.addf %86, %85 : vector<8x128xf32>
    %88 = arith.divf %86, %87 : vector<8x128xf32>
    %89 = math.tanh %83 : vector<8x128xf32>
    %90 = vector.extract_strided_slice %88 {offsets = [0, 0], sizes = [8, 32], strides = [1, 1]} : vector<8x128xf32> to vector<8x32xf32>
    %91 = vector.extract_strided_slice %88 {offsets = [0, 32], sizes = [8, 32], strides = [1, 1]} : vector<8x128xf32> to vector<8x32xf32>
    %92 = vector.extract_strided_slice %89 {offsets = [0, 64], sizes = [8, 32], strides = [1, 1]} : vector<8x128xf32> to vector<8x32xf32>
    %93 = vector.extract_strided_slice %88 {offsets = [0, 96], sizes = [8, 32], strides = [1, 1]} : vector<8x128xf32> to vector<8x32xf32>
    %94 = arith.mulf %91, %78 : vector<8x32xf32>
    %95 = arith.mulf %90, %92 : vector<8x32xf32>
    %96 = arith.addf %94, %95 : vector<8x32xf32>
    %97 = math.tanh %96 : vector<8x32xf32>
    %98 = arith.mulf %93, %97 : vector<8x32xf32>
    %99 = vector.extract_strided_slice %6 {offsets = [40, 0], sizes = [8, 128], strides = [1, 1]} : vector<64x128xf32> to vector<8x128xf32>
    %cst_18 = arith.constant dense<0.000000e+00> : vector<8x128xf32>
    %100 = tpu.matmul %98, %1, %cst_18 {dimension_numbers = #tpu.dot_dimension_numbers<[1], [0], [0], [1], [0, 0, 1, 1], [], []>} : vector<8x32xf32>, vector<32x128xf32>, vector<8x128xf32> -> vector<8x128xf32>
    %101 = arith.addf %99, %100 : vector<8x128xf32>
    %102 = arith.negf %101 : vector<8x128xf32>
    %103 = math.exp %102 : vector<8x128xf32>
    %cst_19 = arith.constant 1.000000e+00 : f32
    %104 = vector.broadcast %cst_19 : f32 to vector<8x128xf32>
    %105 = arith.addf %104, %103 : vector<8x128xf32>
    %106 = arith.divf %104, %105 : vector<8x128xf32>
    %107 = math.tanh %101 : vector<8x128xf32>
    %108 = vector.extract_strided_slice %106 {offsets = [0, 0], sizes = [8, 32], strides = [1, 1]} : vector<8x128xf32> to vector<8x32xf32>
    %109 = vector.extract_strided_slice %106 {offsets = [0, 32], sizes = [8, 32], strides = [1, 1]} : vector<8x128xf32> to vector<8x32xf32>
    %110 = vector.extract_strided_slice %107 {offsets = [0, 64], sizes = [8, 32], strides = [1, 1]} : vector<8x128xf32> to vector<8x32xf32>
    %111 = vector.extract_strided_slice %106 {offsets = [0, 96], sizes = [8, 32], strides = [1, 1]} : vector<8x128xf32> to vector<8x32xf32>
    %112 = arith.mulf %109, %96 : vector<8x32xf32>
    %113 = arith.mulf %108, %110 : vector<8x32xf32>
    %114 = arith.addf %112, %113 : vector<8x32xf32>
    %115 = math.tanh %114 : vector<8x32xf32>
    %116 = arith.mulf %111, %115 : vector<8x32xf32>
    %117 = vector.extract_strided_slice %6 {offsets = [48, 0], sizes = [8, 128], strides = [1, 1]} : vector<64x128xf32> to vector<8x128xf32>
    %cst_20 = arith.constant dense<0.000000e+00> : vector<8x128xf32>
    %118 = tpu.matmul %116, %1, %cst_20 {dimension_numbers = #tpu.dot_dimension_numbers<[1], [0], [0], [1], [0, 0, 1, 1], [], []>} : vector<8x32xf32>, vector<32x128xf32>, vector<8x128xf32> -> vector<8x128xf32>
    %119 = arith.addf %117, %118 : vector<8x128xf32>
    %120 = arith.negf %119 : vector<8x128xf32>
    %121 = math.exp %120 : vector<8x128xf32>
    %cst_21 = arith.constant 1.000000e+00 : f32
    %122 = vector.broadcast %cst_21 : f32 to vector<8x128xf32>
    %123 = arith.addf %122, %121 : vector<8x128xf32>
    %124 = arith.divf %122, %123 : vector<8x128xf32>
    %125 = math.tanh %119 : vector<8x128xf32>
    %126 = vector.extract_strided_slice %124 {offsets = [0, 0], sizes = [8, 32], strides = [1, 1]} : vector<8x128xf32> to vector<8x32xf32>
    %127 = vector.extract_strided_slice %124 {offsets = [0, 32], sizes = [8, 32], strides = [1, 1]} : vector<8x128xf32> to vector<8x32xf32>
    %128 = vector.extract_strided_slice %125 {offsets = [0, 64], sizes = [8, 32], strides = [1, 1]} : vector<8x128xf32> to vector<8x32xf32>
    %129 = vector.extract_strided_slice %124 {offsets = [0, 96], sizes = [8, 32], strides = [1, 1]} : vector<8x128xf32> to vector<8x32xf32>
    %130 = arith.mulf %127, %114 : vector<8x32xf32>
    %131 = arith.mulf %126, %128 : vector<8x32xf32>
    %132 = arith.addf %130, %131 : vector<8x32xf32>
    %133 = math.tanh %132 : vector<8x32xf32>
    %134 = arith.mulf %129, %133 : vector<8x32xf32>
    %135 = vector.extract_strided_slice %6 {offsets = [56, 0], sizes = [8, 128], strides = [1, 1]} : vector<64x128xf32> to vector<8x128xf32>
    %cst_22 = arith.constant dense<0.000000e+00> : vector<8x128xf32>
    %136 = tpu.matmul %134, %1, %cst_22 {dimension_numbers = #tpu.dot_dimension_numbers<[1], [0], [0], [1], [0, 0, 1, 1], [], []>} : vector<8x32xf32>, vector<32x128xf32>, vector<8x128xf32> -> vector<8x128xf32>
    %137 = arith.addf %135, %136 : vector<8x128xf32>
    %138 = arith.negf %137 : vector<8x128xf32>
    %139 = math.exp %138 : vector<8x128xf32>
    %cst_23 = arith.constant 1.000000e+00 : f32
    %140 = vector.broadcast %cst_23 : f32 to vector<8x128xf32>
    %141 = arith.addf %140, %139 : vector<8x128xf32>
    %142 = arith.divf %140, %141 : vector<8x128xf32>
    %143 = math.tanh %137 : vector<8x128xf32>
    %144 = vector.extract_strided_slice %142 {offsets = [0, 0], sizes = [8, 32], strides = [1, 1]} : vector<8x128xf32> to vector<8x32xf32>
    %145 = vector.extract_strided_slice %142 {offsets = [0, 32], sizes = [8, 32], strides = [1, 1]} : vector<8x128xf32> to vector<8x32xf32>
    %146 = vector.extract_strided_slice %143 {offsets = [0, 64], sizes = [8, 32], strides = [1, 1]} : vector<8x128xf32> to vector<8x32xf32>
    %147 = vector.extract_strided_slice %142 {offsets = [0, 96], sizes = [8, 32], strides = [1, 1]} : vector<8x128xf32> to vector<8x32xf32>
    %148 = arith.mulf %145, %132 : vector<8x32xf32>
    %149 = arith.mulf %144, %146 : vector<8x32xf32>
    %150 = arith.addf %148, %149 : vector<8x32xf32>
    %151 = math.tanh %150 : vector<8x32xf32>
    %152 = arith.mulf %147, %151 : vector<8x32xf32>
    %c72 = arith.constant 72 : index
    %c0_24 = arith.constant 0 : index
    %153 = vector.load %arg1[%c72, %c0_24] : memref<88x128xf32, #tpu.memory_space<vmem>>, vector<1x32xf32>
    %c72_25 = arith.constant 72 : index
    %c32_26 = arith.constant 32 : index
    %154 = vector.load %arg1[%c72_25, %c32_26] : memref<88x128xf32, #tpu.memory_space<vmem>>, vector<1x1xf32>
    %155 = vector.broadcast %153 : vector<1x32xf32> to vector<8x32xf32>
    %156 = arith.mulf %152, %155 : vector<8x32xf32>
    %cst_27 = arith.constant dense<0.000000e+00> : vector<8xf32>
    %157 = vector.multi_reduction <add>, %156, %cst_27 [1] : vector<8x32xf32> to vector<8xf32>
    %158 = vector.shape_cast %157 : vector<8xf32> to vector<8x1xf32>
    %159 = vector.broadcast %154 : vector<1x1xf32> to vector<8x1xf32>
    %160 = arith.addf %158, %159 : vector<8x1xf32>
    %cst_28 = arith.constant 0.000000e+00 : f32
    %161 = vector.broadcast %cst_28 : f32 to vector<8x1xf32>
    %162 = arith.maximumf %160, %161 : vector<8x1xf32>
    %163 = math.absf %160 : vector<8x1xf32>
    %cst_29 = arith.constant 0.000000e+00 : f32
    %164 = vector.broadcast %cst_29 : f32 to vector<8x1xf32>
    %165 = arith.subf %164, %163 : vector<8x1xf32>
    %166 = math.exp %165 : vector<8x1xf32>
    %cst_30 = arith.constant 1.000000e+00 : f32
    %167 = vector.broadcast %cst_30 : f32 to vector<8x1xf32>
    %168 = arith.addf %167, %166 : vector<8x1xf32>
    %169 = math.log %168 : vector<8x1xf32>
    %170 = arith.addf %162, %169 : vector<8x1xf32>
    %cst_31 = arith.constant 0.000000e+00 : f32
    %171 = vector.broadcast %cst_31 : f32 to vector<8x1xf32>
    %172 = arith.subf %171, %170 : vector<8x1xf32>
    %cst_32 = arith.constant 0.000000e+00 : f32
    %173 = vector.broadcast %cst_32 : f32 to vector<8x1xf32>
    %174 = arith.subf %173, %160 : vector<8x1xf32>
    %cst_33 = arith.constant 0.000000e+00 : f32
    %175 = vector.broadcast %cst_33 : f32 to vector<8x1xf32>
    %176 = arith.maximumf %174, %175 : vector<8x1xf32>
    %177 = math.absf %174 : vector<8x1xf32>
    %cst_34 = arith.constant 0.000000e+00 : f32
    %178 = vector.broadcast %cst_34 : f32 to vector<8x1xf32>
    %179 = arith.subf %178, %177 : vector<8x1xf32>
    %180 = math.exp %179 : vector<8x1xf32>
    %cst_35 = arith.constant 1.000000e+00 : f32
    %181 = vector.broadcast %cst_35 : f32 to vector<8x1xf32>
    %182 = arith.addf %181, %180 : vector<8x1xf32>
    %183 = math.log %182 : vector<8x1xf32>
    %184 = arith.addf %176, %183 : vector<8x1xf32>
    %cst_36 = arith.constant 0.000000e+00 : f32
    %185 = vector.broadcast %cst_36 : f32 to vector<8x1xf32>
    %186 = arith.subf %185, %184 : vector<8x1xf32>
    %cst_37 = arith.constant 0.000000e+00 : f32
    %187 = vector.broadcast %cst_37 : f32 to vector<8x128xf32>
    %c0_38 = arith.constant 0 : index
    %c0_39 = arith.constant 0 : index
    %188 = vector.load %arg2[%c0_38, %c0_39] : memref<8x128xf32, #tpu.memory_space<vmem>>, vector<8x128xf32>
    tpu.vector_store %arg2[%c0_38, %c0_39], %187 {strides = array<i32>} : memref<8x128xf32, #tpu.memory_space<vmem>>, vector<8x128xf32>,
    %c0_40 = arith.constant 0 : index
    %c0_41 = arith.constant 0 : index
    %189 = vector.load %arg2[%c0_40, %c0_41] : memref<8x128xf32, #tpu.memory_space<vmem>>, vector<8x32xf32>
    tpu.vector_store %arg2[%c0_40, %c0_41], %152 {strides = array<i32>} : memref<8x128xf32, #tpu.memory_space<vmem>>, vector<8x32xf32>,
    %c0_42 = arith.constant 0 : index
    %c32_43 = arith.constant 32 : index
    %190 = vector.load %arg2[%c0_42, %c32_43] : memref<8x128xf32, #tpu.memory_space<vmem>>, vector<8x32xf32>
    tpu.vector_store %arg2[%c0_42, %c32_43], %150 {strides = array<i32>} : memref<8x128xf32, #tpu.memory_space<vmem>>, vector<8x32xf32>,
    %c0_44 = arith.constant 0 : index
    %c64_45 = arith.constant 64 : index
    %191 = vector.load %arg2[%c0_44, %c64_45] : memref<8x128xf32, #tpu.memory_space<vmem>>, vector<8x1xf32>
    tpu.vector_store %arg2[%c0_44, %c64_45], %172 {strides = array<i32>} : memref<8x128xf32, #tpu.memory_space<vmem>>, vector<8x1xf32>,
    %c0_46 = arith.constant 0 : index
    %c65 = arith.constant 65 : index
    %192 = vector.load %arg2[%c0_46, %c65] : memref<8x128xf32, #tpu.memory_space<vmem>>, vector<8x1xf32>
    tpu.vector_store %arg2[%c0_46, %c65], %186 {strides = array<i32>} : memref<8x128xf32, #tpu.memory_space<vmem>>, vector<8x1xf32>,
    return
  }
}

</mosaic_0001>

<llo_original>
// kernel: lstm_classifier_forward.1
$region0: #{lstm_classifier_forward.1}
  #allocation0 [shape = 'u32[]', space=smem, size = 0x4, offset = 0x4, fixed_abs, tag = 'smem constant byte address 0x4 - core index']
  #allocation1 [shape = 'u32[144,128]{1,0:T(1,128)}', space=vmem, size = 0x12000, scoped, tag = 'internal scratch']
  %s0 = inlined_call_operand.vmem [shape: f32[64,32], index: 0, kind: input, shape index: {}]
  %s1 = inlined_call_operand.vmem [shape: f32[88,128], index: 1, kind: input, shape index: {}]
  %s2 = inlined_call_operand.vmem [shape: f32[8,128], index: 2, kind: output, shape index: {}]
  %s3 = sld [smem:[#allocation0]]
  $region18: #{lstm_classifier_forward.1} parent=0
    _
  %s5 = ssub.s32 1, %s3
  %s6 = scalar_select 0, %s5, %s3
  // Predicated region
  $region2: #{lstm_classifier_forward.1} parent=0 // pred_check
    _
  $region3: #{lstm_classifier_forward.1} parent=0 // pred_check_branch
    %8 = sbr.rel (0) target = $region5
  $region4: #{lstm_classifier_forward.1} parent=0 // pred_region
    _
  $region5: #{lstm_classifier_forward.1} parent=0 // pred_fallthru
    _
  // Predicated region
  $region6: #{lstm_classifier_forward.1} parent=0 // pred_check
    _
  $region7: #{lstm_classifier_forward.1} parent=0 // pred_check_branch
    %10 = sbr.rel (0) target = $region9
  $region8: #{lstm_classifier_forward.1} parent=0 // pred_region
    _
  $region9: #{lstm_classifier_forward.1} parent=0 // pred_fallthru
    _
  %v11 = vld [vmem:[%s1] sm:$0xff]
  %v12 = vld [vmem:[%s1 + $0x8] sm:$0xff]
  %v13 = vld [vmem:[%s1 + $0x10] sm:$0xff]
  %v14 = vld [vmem:[%s1 + $0x18] sm:$0xff]
  %v15 = vld [vmem:[%s1 + $0x20] sm:$0xff]
  %v16 = vld [vmem:[%s1 + $0x28] sm:$0xff]
  %v17 = vld [vmem:[%s1 + $0x30] sm:$0xff]
  %v18 = vld [vmem:[%s1 + $0x38] sm:$0xff]
  %v19 = vld [vmem:[%s1 + $0x40] sm:$0x1]
  %v20 = vld [vmem:[%s0] sm:$0xff]
  %v21 = vld [vmem:[%s0 + $0x8] sm:$0xff]
  %v22 = vld [vmem:[%s0 + $0x10] sm:$0xff]
  %v23 = vld [vmem:[%s0 + $0x18] sm:$0xff]
  %v24 = vld [vmem:[%s0 + $0x20] sm:$0xff]
  %v25 = vld [vmem:[%s0 + $0x28] sm:$0xff]
  %v26 = vld [vmem:[%s0 + $0x30] sm:$0xff]
  %v27 = vld [vmem:[%s0 + $0x38] sm:$0xff]
  %v28 = vlaneseq
  %v29 = vshrl.u32 %v28, 7
  %v30 = vsub.s32 0, %v29
  %v31 = vrot.slane %v19, %v30
  %vm32 = vcmask 261120
  %v34 = vsel %vm32, %v20, 0
  %v37 = vsel %vm32, %v21, 0
  %v40 = vsel %vm32, %v22, 0
  %v43 = vsel %vm32, %v23, 0
  %v46 = vsel %vm32, %v24, 0
  %v49 = vsel %vm32, %v25, 0
  %v52 = vsel %vm32, %v26, 0
  %v55 = vsel %vm32, %v27, 0
  %57 = vmatprep.subr.mxu0 0.0
  %58 = vmatpush1.msra.mxu0 %v11
  %59 = vmatprep.subr.mxu0 0.0
  %60 = vmatpush1.msra.mxu0 %v12
  %61 = vmatprep.subr.mxu0 0.0
  %62 = vmatpush1.msra.mxu0 %v13
  %63 = vmatprep.subr.mxu0 0.0
  %64 = vmatpush1.msra.mxu0 %v14
  %65 = vmatprep.subr.mxu0 0.0
  %66 = vmatpush1.msra.mxu0 0.0
  %67 = vmatprep.subr.mxu0 0.0
  %68 = vmatpush1.msra.mxu0 0.0
  %69 = vmatprep.subr.mxu0 0.0
  %70 = vmatpush1.msra.mxu0 0.0
  %71 = vmatprep.subr.mxu0 0.0
  %72 = vmatpush1.msra.mxu0 0.0
  %73 = vmatprep.subr.mxu0 0.0
  %74 = vmatpush1.msra.mxu0 0.0
  %75 = vmatprep.subr.mxu0 0.0
  %76 = vmatpush1.msra.mxu0 0.0
  %77 = vmatprep.subr.mxu0 0.0
  %78 = vmatpush1.msra.mxu0 0.0
  %79 = vmatprep.subr.mxu0 0.0
  %80 = vmatpush1.msra.mxu0 0.0
  %81 = vmatprep.subr.mxu0 0.0
  %82 = vmatpush1.msra.mxu0 0.0
  %83 = vmatprep.subr.mxu0 0.0
  %84 = vmatpush1.msra.mxu0 0.0
  %85 = vmatprep.subr.mxu0 0.0
  %86 = vmatpush1.msra.mxu0 0.0
  %87 = vmatprep.subr.mxu0 0.0
  %88 = vmatpush1.msra.mxu0 0.0
  %89 = vmatprep.subr.mxu0 0.0
  %90 = vmatpush1.msra.mxu0 0.0
  %91 = vmatprep.subr.mxu0 0.0
  %92 = vmatpush1.msra.mxu0 0.0
  %93 = vmatprep.subr.mxu0 0.0
  %94 = vmatpush1.msra.mxu0 0.0
  %95 = vmatprep.subr.mxu0 0.0
  %96 = vmatpush1.msra.mxu0 0.0
  %97 = vmatprep.subr.mxu0 0.0
  %98 = vmatpush1.msra.mxu0 0.0
  %99 = vmatprep.subr.mxu0 0.0
  %100 = vmatpush1.msra.mxu0 0.0
  %101 = vmatprep.subr.mxu0 0.0
  %102 = vmatpush1.msra.mxu0 0.0
  %103 = vmatprep.subr.mxu0 0.0
  %104 = vmatpush1.msra.mxu0 0.0
  %105 = vmatprep.subr.mxu0 0.0
  %106 = vmatpush1.msra.mxu0 0.0
  %107 = vmatprep.subr.mxu0 0.0
  %108 = vmatpush1.msra.mxu0 0.0
  %109 = vmatprep.subr.mxu0 0.0
  %110 = vmatpush1.msra.mxu0 0.0
  %111 = vmatprep.subr.mxu0 0.0
  %112 = vmatpush1.msra.mxu0 0.0
  %113 = vmatprep.subr.mxu0 0.0
  %114 = vmatpush1.msra.mxu0 0.0
  %115 = vmatprep.subr.mxu0 0.0
  %116 = vmatpush1.msra.mxu0 0.0
  %117 = vmatprep.subr.mxu0 0.0
  %118 = vmatpush1.msra.mxu0 0.0
  %119 = vmatprep.subr.mxu0 0.0
  %120 = vmatpush1.msra.mxu0 0.0
  %121 = vmatprep.mubr.f32.mxu0 0.0
  %122 = vmatmul.mubr.f32.gmra.mrb[0].mxu0 %v34
  %v123 = vpop.f32.mrb[0].mxu0
  %v124 = vadd.f32 %v31, %v123
  %v125 = vpop.f32.mrb[0].mxu0
  %126 = vmatprep.mubr.f32.mxu0 0.0
  %127 = vmatmul.mubr.f32.gmra.mrb[0].mxu0 %v37
  %v128 = vpop.f32.mrb[0].mxu0
  %v129 = vadd.f32 %v31, %v128
  %v130 = vpop.f32.mrb[0].mxu0
  %131 = vmatprep.mubr.f32.mxu0 0.0
  %132 = vmatmul.mubr.f32.gmra.mrb[0].mxu0 %v40
  %v133 = vpop.f32.mrb[0].mxu0
  %v134 = vadd.f32 %v31, %v133
  %v135 = vpop.f32.mrb[0].mxu0
  %136 = vmatprep.mubr.f32.mxu0 0.0
  %137 = vmatmul.mubr.f32.gmra.mrb[0].mxu0 %v43
  %v138 = vpop.f32.mrb[0].mxu0
  %v139 = vadd.f32 %v31, %v138
  %v140 = vpop.f32.mrb[0].mxu0
  %141 = vmatprep.mubr.f32.mxu0 0.0
  %142 = vmatmul.mubr.f32.gmra.mrb[0].mxu0 %v46
  %v143 = vpop.f32.mrb[0].mxu0
  %v144 = vadd.f32 %v31, %v143
  %v145 = vpop.f32.mrb[0].mxu0
  %146 = vmatprep.mubr.f32.mxu0 0.0
  %147 = vmatmul.mubr.f32.gmra.mrb[0].mxu0 %v49
  %v148 = vpop.f32.mrb[0].mxu0
  %v149 = vadd.f32 %v31, %v148
  %v150 = vpop.f32.mrb[0].mxu0
  %151 = vmatprep.mubr.f32.mxu0 0.0
  %152 = vmatmul.mubr.f32.gmra.mrb[0].mxu0 %v52
  %v153 = vpop.f32.mrb[0].mxu0
  %v154 = vadd.f32 %v31, %v153
  %v155 = vpop.f32.mrb[0].mxu0
  %156 = vmatprep.mubr.f32.mxu0 0.0
  %157 = vmatmul.mubr.f32.gmra.mrb[0].mxu0 %v55
  %v158 = vpop.f32.mrb[0].mxu0
  %v159 = vadd.f32 %v31, %v158
  %v160 = vpop.f32.mrb[0].mxu0
  %161 = vdwg.mxu0
  %v162 = vld [vmem:[%s1 + $0x50] sm:$0xff]
  %v164 = vsel %vm32, %v162, 0
  %166 = vmatprep.subr.mxu0 0.0
  %167 = vmatpush1.msra.mxu0 %v15
  %168 = vmatprep.subr.mxu0 0.0
  %169 = vmatpush1.msra.mxu0 %v16
  %170 = vmatprep.subr.mxu0 0.0
  %171 = vmatpush1.msra.mxu0 %v17
  %172 = vmatprep.subr.mxu0 0.0
  %173 = vmatpush1.msra.mxu0 %v18
  %174 = vmatprep.subr.mxu0 0.0
  %175 = vmatpush1.msra.mxu0 0.0
  %176 = vmatprep.subr.mxu0 0.0
  %177 = vmatpush1.msra.mxu0 0.0
  %178 = vmatprep.subr.mxu0 0.0
  %179 = vmatpush1.msra.mxu0 0.0
  %180 = vmatprep.subr.mxu0 0.0
  %181 = vmatpush1.msra.mxu0 0.0
  %182 = vmatprep.subr.mxu0 0.0
  %183 = vmatpush1.msra.mxu0 0.0
  %184 = vmatprep.subr.mxu0 0.0
  %185 = vmatpush1.msra.mxu0 0.0
  %186 = vmatprep.subr.mxu0 0.0
  %187 = vmatpush1.msra.mxu0 0.0
  %188 = vmatprep.subr.mxu0 0.0
  %189 = vmatpush1.msra.mxu0 0.0
  %190 = vmatprep.subr.mxu0 0.0
  %191 = vmatpush1.msra.mxu0 0.0
  %192 = vmatprep.subr.mxu0 0.0
  %193 = vmatpush1.msra.mxu0 0.0
  %194 = vmatprep.subr.mxu0 0.0
  %195 = vmatpush1.msra.mxu0 0.0
  %196 = vmatprep.subr.mxu0 0.0
  %197 = vmatpush1.msra.mxu0 0.0
  %198 = vmatprep.subr.mxu0 0.0
  %199 = vmatpush1.msra.mxu0 0.0
  %200 = vmatprep.subr.mxu0 0.0
  %201 = vmatpush1.msra.mxu0 0.0
  %202 = vmatprep.subr.mxu0 0.0
  %203 = vmatpush1.msra.mxu0 0.0
  %204 = vmatprep.subr.mxu0 0.0
  %205 = vmatpush1.msra.mxu0 0.0
  %206 = vmatprep.subr.mxu0 0.0
  %207 = vmatpush1.msra.mxu0 0.0
  %208 = vmatprep.subr.mxu0 0.0
  %209 = vmatpush1.msra.mxu0 0.0
  %210 = vmatprep.subr.mxu0 0.0
  %211 = vmatpush1.msra.mxu0 0.0
  %212 = vmatprep.subr.mxu0 0.0
  %213 = vmatpush1.msra.mxu0 0.0
  %214 = vmatprep.subr.mxu0 0.0
  %215 = vmatpush1.msra.mxu0 0.0
  %216 = vmatprep.subr.mxu0 0.0
  %217 = vmatpush1.msra.mxu0 0.0
  %218 = vmatprep.subr.mxu0 0.0
  %219 = vmatpush1.msra.mxu0 0.0
  %220 = vmatprep.subr.mxu0 0.0
  %221 = vmatpush1.msra.mxu0 0.0
  %222 = vmatprep.subr.mxu0 0.0
  %223 = vmatpush1.msra.mxu0 0.0
  %224 = vmatprep.subr.mxu0 0.0
  %225 = vmatpush1.msra.mxu0 0.0
  %226 = vmatprep.subr.mxu0 0.0
  %227 = vmatpush1.msra.mxu0 0.0
  %228 = vmatprep.subr.mxu0 0.0
  %229 = vmatpush1.msra.mxu0 0.0
  %230 = vmatprep.mubr.f32.mxu0 0.0
  %231 = vmatmul.mubr.f32.gmra.mrb[0].mxu0 %v164
  %v232 = vpop.f32.mrb[0].mxu0
  %v233 = vadd.f32 0.0, %v232
  %v234 = vpop.f32.mrb[0].mxu0
  %235 = vdwg.mxu0
  %v236 = vadd.f32 %v124, %v233
  %v237 = vxor.u32 %v236, 2147483648
  %v238 = vmul.f32 %v237, 1.442695
  %v239 = vpow.pop %v238
  %v240 = vadd.f32 %v239, 1.0
  %v241 = vrcp.pop %v240
  %v242 = vmul.f32 1.0, %v241
  %v243 = vtanh.pop %v236
  %v244 = vmul.f32 %v242, %v162
  %246 = vrot.lane.b32.xlu0 %v243, 64
  %v247 = vpop.permute.xlu0 %246
  %v249 = vmul.f32 %v242, %v247
  %251 = vrot.lane.b32.xlu0 %v249, 32
  %v252 = vpop.permute.xlu0 %251
  %v254 = vadd.f32 %v244, %v252
  %v255 = vtanh.pop %v254
  %257 = vrot.lane.b32.xlu0 %v255, 64
  %v258 = vpop.permute.xlu0 %257
  %v260 = vmul.f32 %v242, %v258
  %262 = vrot.lane.b32.xlu0 %v260, 32
  %v263 = vpop.permute.xlu0 %262
  %v264 = vsel %vm32, %v263, 0
  %266 = vmatprep.subr.mxu0 0.0
  %267 = vmatpush1.msra.mxu0 %v15
  %268 = vmatprep.subr.mxu0 0.0
  %269 = vmatpush1.msra.mxu0 %v16
  %270 = vmatprep.subr.mxu0 0.0
  %271 = vmatpush1.msra.mxu0 %v17
  %272 = vmatprep.subr.mxu0 0.0
  %273 = vmatpush1.msra.mxu0 %v18
  %274 = vmatprep.subr.mxu0 0.0
  %275 = vmatpush1.msra.mxu0 0.0
  %276 = vmatprep.subr.mxu0 0.0
  %277 = vmatpush1.msra.mxu0 0.0
  %278 = vmatprep.subr.mxu0 0.0
  %279 = vmatpush1.msra.mxu0 0.0
  %280 = vmatprep.subr.mxu0 0.0
  %281 = vmatpush1.msra.mxu0 0.0
  %282 = vmatprep.subr.mxu0 0.0
  %283 = vmatpush1.msra.mxu0 0.0
  %284 = vmatprep.subr.mxu0 0.0
  %285 = vmatpush1.msra.mxu0 0.0
  %286 = vmatprep.subr.mxu0 0.0
  %287 = vmatpush1.msra.mxu0 0.0
  %288 = vmatprep.subr.mxu0 0.0
  %289 = vmatpush1.msra.mxu0 0.0
  %290 = vmatprep.subr.mxu0 0.0
  %291 = vmatpush1.msra.mxu0 0.0
  %292 = vmatprep.subr.mxu0 0.0
  %293 = vmatpush1.msra.mxu0 0.0
  %294 = vmatprep.subr.mxu0 0.0
  %295 = vmatpush1.msra.mxu0 0.0
  %296 = vmatprep.subr.mxu0 0.0
  %297 = vmatpush1.msra.mxu0 0.0
  %298 = vmatprep.subr.mxu0 0.0
  %299 = vmatpush1.msra.mxu0 0.0
  %300 = vmatprep.subr.mxu0 0.0
  %301 = vmatpush1.msra.mxu0 0.0
  %302 = vmatprep.subr.mxu0 0.0
  %303 = vmatpush1.msra.mxu0 0.0
  %304 = vmatprep.subr.mxu0 0.0
  %305 = vmatpush1.msra.mxu0 0.0
  %306 = vmatprep.subr.mxu0 0.0
  %307 = vmatpush1.msra.mxu0 0.0
  %308 = vmatprep.subr.mxu0 0.0
  %309 = vmatpush1.msra.mxu0 0.0
  %310 = vmatprep.subr.mxu0 0.0
  %311 = vmatpush1.msra.mxu0 0.0
  %312 = vmatprep.subr.mxu0 0.0
  %313 = vmatpush1.msra.mxu0 0.0
  %314 = vmatprep.subr.mxu0 0.0
  %315 = vmatpush1.msra.mxu0 0.0
  %316 = vmatprep.subr.mxu0 0.0
  %317 = vmatpush1.msra.mxu0 0.0
  %318 = vmatprep.subr.mxu0 0.0
  %319 = vmatpush1.msra.mxu0 0.0
  %320 = vmatprep.subr.mxu0 0.0
  %321 = vmatpush1.msra.mxu0 0.0
  %322 = vmatprep.subr.mxu0 0.0
  %323 = vmatpush1.msra.mxu0 0.0
  %324 = vmatprep.subr.mxu0 0.0
  %325 = vmatpush1.msra.mxu0 0.0
  %326 = vmatprep.subr.mxu0 0.0
  %327 = vmatpush1.msra.mxu0 0.0
  %328 = vmatprep.subr.mxu0 0.0
  %329 = vmatpush1.msra.mxu0 0.0
  %330 = vmatprep.mubr.f32.mxu0 0.0
  %331 = vmatmul.mubr.f32.gmra.mrb[0].mxu0 %v264
  %v332 = vpop.f32.mrb[0].mxu0
  %v333 = vadd.f32 0.0, %v332
  %v334 = vpop.f32.mrb[0].mxu0
  %335 = vdwg.mxu0
  %v336 = vadd.f32 %v129, %v333
  %v337 = vxor.u32 %v336, 2147483648
  %v338 = vmul.f32 %v337, 1.442695
  %v339 = vpow.pop %v338
  %v340 = vadd.f32 %v339, 1.0
  %v341 = vrcp.pop %v340
  %v342 = vmul.f32 1.0, %v341
  %v343 = vtanh.pop %v336
  %v344 = vmul.f32 %v342, %v254
  %346 = vrot.lane.b32.xlu0 %v343, 64
  %v347 = vpop.permute.xlu0 %346
  %v349 = vmul.f32 %v342, %v347
  %351 = vrot.lane.b32.xlu0 %v349, 32
  %v352 = vpop.permute.xlu0 %351
  %v354 = vadd.f32 %v344, %v352
  %v355 = vtanh.pop %v354
  %357 = vrot.lane.b32.xlu0 %v355, 64
  %v358 = vpop.permute.xlu0 %357
  %v360 = vmul.f32 %v342, %v358
  %362 = vrot.lane.b32.xlu0 %v360, 32
  %v363 = vpop.permute.xlu0 %362
  %v364 = vsel %vm32, %v363, 0
  %366 = vmatprep.subr.mxu0 0.0
  %367 = vmatpush1.msra.mxu0 %v15
  %368 = vmatprep.subr.mxu0 0.0
  %369 = vmatpush1.msra.mxu0 %v16
  %370 = vmatprep.subr.mxu0 0.0
  %371 = vmatpush1.msra.mxu0 %v17
  %372 = vmatprep.subr.mxu0 0.0
  %373 = vmatpush1.msra.mxu0 %v18
  %374 = vmatprep.subr.mxu0 0.0
  %375 = vmatpush1.msra.mxu0 0.0
  %376 = vmatprep.subr.mxu0 0.0
  %377 = vmatpush1.msra.mxu0 0.0
  %378 = vmatprep.subr.mxu0 0.0
  %379 = vmatpush1.msra.mxu0 0.0
  %380 = vmatprep.subr.mxu0 0.0
  %381 = vmatpush1.msra.mxu0 0.0
  %382 = vmatprep.subr.mxu0 0.0
  %383 = vmatpush1.msra.mxu0 0.0
  %384 = vmatprep.subr.mxu0 0.0
  %385 = vmatpush1.msra.mxu0 0.0
  %386 = vmatprep.subr.mxu0 0.0
  %387 = vmatpush1.msra.mxu0 0.0
  %388 = vmatprep.subr.mxu0 0.0
  %389 = vmatpush1.msra.mxu0 0.0
  %390 = vmatprep.subr.mxu0 0.0
  %391 = vmatpush1.msra.mxu0 0.0
  %392 = vmatprep.subr.mxu0 0.0
  %393 = vmatpush1.msra.mxu0 0.0
  %394 = vmatprep.subr.mxu0 0.0
  %395 = vmatpush1.msra.mxu0 0.0
  %396 = vmatprep.subr.mxu0 0.0
  %397 = vmatpush1.msra.mxu0 0.0
  %398 = vmatprep.subr.mxu0 0.0
  %399 = vmatpush1.msra.mxu0 0.0
  %400 = vmatprep.subr.mxu0 0.0
  %401 = vmatpush1.msra.mxu0 0.0
  %402 = vmatprep.subr.mxu0 0.0
  %403 = vmatpush1.msra.mxu0 0.0
  %404 = vmatprep.subr.mxu0 0.0
  %405 = vmatpush1.msra.mxu0 0.0
  %406 = vmatprep.subr.mxu0 0.0
  %407 = vmatpush1.msra.mxu0 0.0
  %408 = vmatprep.subr.mxu0 0.0
  %409 = vmatpush1.msra.mxu0 0.0
  %410 = vmatprep.subr.mxu0 0.0
  %411 = vmatpush1.msra.mxu0 0.0
  %412 = vmatprep.subr.mxu0 0.0
  %413 = vmatpush1.msra.mxu0 0.0
  %414 = vmatprep.subr.mxu0 0.0
  %415 = vmatpush1.msra.mxu0 0.0
  %416 = vmatprep.subr.mxu0 0.0
  %417 = vmatpush1.msra.mxu0 0.0
  %418 = vmatprep.subr.mxu0 0.0
  %419 = vmatpush1.msra.mxu0 0.0
  %420 = vmatprep.subr.mxu0 0.0
  %421 = vmatpush1.msra.mxu0 0.0
  %422 = vmatprep.subr.mxu0 0.0
  %423 = vmatpush1.msra.mxu0 0.0
  %424 = vmatprep.subr.mxu0 0.0
  %425 = vmatpush1.msra.mxu0 0.0
  %426 = vmatprep.subr.mxu0 0.0
  %427 = vmatpush1.msra.mxu0 0.0
  %428 = vmatprep.subr.mxu0 0.0
  %429 = vmatpush1.msra.mxu0 0.0
  %430 = vmatprep.mubr.f32.mxu0 0.0
  %431 = vmatmul.mubr.f32.gmra.mrb[0].mxu0 %v364
  %v432 = vpop.f32.mrb[0].mxu0
  %v433 = vadd.f32 0.0, %v432
  %v434 = vpop.f32.mrb[0].mxu0
  %435 = vdwg.mxu0
  %v436 = vadd.f32 %v134, %v433
  %v437 = vxor.u32 %v436, 2147483648
  %v438 = vmul.f32 %v437, 1.442695
  %v439 = vpow.pop %v438
  %v440 = vadd.f32 %v439, 1.0
  %v441 = vrcp.pop %v440
  %v442 = vmul.f32 1.0, %v441
  %v443 = vtanh.pop %v436
  %v444 = vmul.f32 %v442, %v354
  %446 = vrot.lane.b32.xlu0 %v443, 64
  %v447 = vpop.permute.xlu0 %446
  %v449 = vmul.f32 %v442, %v447
  %451 = vrot.lane.b32.xlu0 %v449, 32
  %v452 = vpop.permute.xlu0 %451
  %v454 = vadd.f32 %v444, %v452
  %v455 = vtanh.pop %v454
  %457 = vrot.lane.b32.xlu0 %v455, 64
  %v458 = vpop.permute.xlu0 %457
  %v460 = vmul.f32 %v442, %v458
  %462 = vrot.lane.b32.xlu0 %v460, 32
  %v463 = vpop.permute.xlu0 %462
  %v464 = vsel %vm32, %v463, 0
  %466 = vmatprep.subr.mxu0 0.0
  %467 = vmatpush1.msra.mxu0 %v15
  %468 = vmatprep.subr.mxu0 0.0
  %469 = vmatpush1.msra.mxu0 %v16
  %470 = vmatprep.subr.mxu0 0.0
  %471 = vmatpush1.msra.mxu0 %v17
  %472 = vmatprep.subr.mxu0 0.0
  %473 = vmatpush1.msra.mxu0 %v18
  %474 = vmatprep.subr.mxu0 0.0
  %475 = vmatpush1.msra.mxu0 0.0
  %476 = vmatprep.subr.mxu0 0.0
  %477 = vmatpush1.msra.mxu0 0.0
  %478 = vmatprep.subr.mxu0 0.0
  %479 = vmatpush1.msra.mxu0 0.0
  %480 = vmatprep.subr.mxu0 0.0
  %481 = vmatpush1.msra.mxu0 0.0
  %482 = vmatprep.subr.mxu0 0.0
  %483 = vmatpush1.msra.mxu0 0.0
  %484 = vmatprep.subr.mxu0 0.0
  %485 = vmatpush1.msra.mxu0 0.0
  %486 = vmatprep.subr.mxu0 0.0
  %487 = vmatpush1.msra.mxu0 0.0
  %488 = vmatprep.subr.mxu0 0.0
  %489 = vmatpush1.msra.mxu0 0.0
  %490 = vmatprep.subr.mxu0 0.0
  %491 = vmatpush1.msra.mxu0 0.0
  %492 = vmatprep.subr.mxu0 0.0
  %493 = vmatpush1.msra.mxu0 0.0
  %494 = vmatprep.subr.mxu0 0.0
  %495 = vmatpush1.msra.mxu0 0.0
  %496 = vmatprep.subr.mxu0 0.0
  %497 = vmatpush1.msra.mxu0 0.0
  %498 = vmatprep.subr.mxu0 0.0
  %499 = vmatpush1.msra.mxu0 0.0
  %500 = vmatprep.subr.mxu0 0.0
  %501 = vmatpush1.msra.mxu0 0.0
  %502 = vmatprep.subr.mxu0 0.0
  %503 = vmatpush1.msra.mxu0 0.0
  %504 = vmatprep.subr.mxu0 0.0
  %505 = vmatpush1.msra.mxu0 0.0
  %506 = vmatprep.subr.mxu0 0.0
  %507 = vmatpush1.msra.mxu0 0.0
  %508 = vmatprep.subr.mxu0 0.0
  %509 = vmatpush1.msra.mxu0 0.0
  %510 = vmatprep.subr.mxu0 0.0
  %511 = vmatpush1.msra.mxu0 0.0
  %512 = vmatprep.subr.mxu0 0.0
  %513 = vmatpush1.msra.mxu0 0.0
  %514 = vmatprep.subr.mxu0 0.0
  %515 = vmatpush1.msra.mxu0 0.0
  %516 = vmatprep.subr.mxu0 0.0
  %517 = vmatpush1.msra.mxu0 0.0
  %518 = vmatprep.subr.mxu0 0.0
  %519 = vmatpush1.msra.mxu0 0.0
  %520 = vmatprep.subr.mxu0 0.0
  %521 = vmatpush1.msra.mxu0 0.0
  %522 = vmatprep.subr.mxu0 0.0
  %523 = vmatpush1.msra.mxu0 0.0
  %524 = vmatprep.subr.mxu0 0.0
  %525 = vmatpush1.msra.mxu0 0.0
  %526 = vmatprep.subr.mxu0 0.0
  %527 = vmatpush1.msra.mxu0 0.0
  %528 = vmatprep.subr.mxu0 0.0
  %529 = vmatpush1.msra.mxu0 0.0
  %530 = vmatprep.mubr.f32.mxu0 0.0
  %531 = vmatmul.mubr.f32.gmra.mrb[0].mxu0 %v464
  %v532 = vpop.f32.mrb[0].mxu0
  %v533 = vadd.f32 0.0, %v532
  %v534 = vpop.f32.mrb[0].mxu0
  %535 = vdwg.mxu0
  %v536 = vadd.f32 %v139, %v533
  %v537 = vxor.u32 %v536, 2147483648
  %v538 = vmul.f32 %v537, 1.442695
  %v539 = vpow.pop %v538
  %v540 = vadd.f32 %v539, 1.0
  %v541 = vrcp.pop %v540
  %v542 = vmul.f32 1.0, %v541
  %v543 = vtanh.pop %v536
  %v544 = vmul.f32 %v542, %v454
  %546 = vrot.lane.b32.xlu0 %v543, 64
  %v547 = vpop.permute.xlu0 %546
  %v549 = vmul.f32 %v542, %v547
  %551 = vrot.lane.b32.xlu0 %v549, 32
  %v552 = vpop.permute.xlu0 %551
  %v554 = vadd.f32 %v544, %v552
  %v555 = vtanh.pop %v554
  %557 = vrot.lane.b32.xlu0 %v555, 64
  %v558 = vpop.permute.xlu0 %557
  %v560 = vmul.f32 %v542, %v558
  %562 = vrot.lane.b32.xlu0 %v560, 32
  %v563 = vpop.permute.xlu0 %562
  %v564 = vsel %vm32, %v563, 0
  %566 = vmatprep.subr.mxu0 0.0
  %567 = vmatpush1.msra.mxu0 %v15
  %568 = vmatprep.subr.mxu0 0.0
  %569 = vmatpush1.msra.mxu0 %v16
  %570 = vmatprep.subr.mxu0 0.0
  %571 = vmatpush1.msra.mxu0 %v17
  %572 = vmatprep.subr.mxu0 0.0
  %573 = vmatpush1.msra.mxu0 %v18
  %574 = vmatprep.subr.mxu0 0.0
  %575 = vmatpush1.msra.mxu0 0.0
  %576 = vmatprep.subr.mxu0 0.0
  %577 = vmatpush1.msra.mxu0 0.0
  %578 = vmatprep.subr.mxu0 0.0
  %579 = vmatpush1.msra.mxu0 0.0
  %580 = vmatprep.subr.mxu0 0.0
  %581 = vmatpush1.msra.mxu0 0.0
  %582 = vmatprep.subr.mxu0 0.0
  %583 = vmatpush1.msra.mxu0 0.0
  %584 = vmatprep.subr.mxu0 0.0
  %585 = vmatpush1.msra.mxu0 0.0
  %586 = vmatprep.subr.mxu0 0.0
  %587 = vmatpush1.msra.mxu0 0.0
  %588 = vmatprep.subr.mxu0 0.0
  %589 = vmatpush1.msra.mxu0 0.0
  %590 = vmatprep.subr.mxu0 0.0
  %591 = vmatpush1.msra.mxu0 0.0
  %592 = vmatprep.subr.mxu0 0.0
  %593 = vmatpush1.msra.mxu0 0.0
  %594 = vmatprep.subr.mxu0 0.0
  %595 = vmatpush1.msra.mxu0 0.0
  %596 = vmatprep.subr.mxu0 0.0
  %597 = vmatpush1.msra.mxu0 0.0
  %598 = vmatprep.subr.mxu0 0.0
  %599 = vmatpush1.msra.mxu0 0.0
  %600 = vmatprep.subr.mxu0 0.0
  %601 = vmatpush1.msra.mxu0 0.0
  %602 = vmatprep.subr.mxu0 0.0
  %603 = vmatpush1.msra.mxu0 0.0
  %604 = vmatprep.subr.mxu0 0.0
  %605 = vmatpush1.msra.mxu0 0.0
  %606 = vmatprep.subr.mxu0 0.0
  %607 = vmatpush1.msra.mxu0 0.0
  %608 = vmatprep.subr.mxu0 0.0
  %609 = vmatpush1.msra.mxu0 0.0
  %610 = vmatprep.subr.mxu0 0.0
  %611 = vmatpush1.msra.mxu0 0.0
  %612 = vmatprep.subr.mxu0 0.0
  %613 = vmatpush1.msra.mxu0 0.0
  %614 = vmatprep.subr.mxu0 0.0
  %615 = vmatpush1.msra.mxu0 0.0
  %616 = vmatprep.subr.mxu0 0.0
  %617 = vmatpush1.msra.mxu0 0.0
  %618 = vmatprep.subr.mxu0 0.0
  %619 = vmatpush1.msra.mxu0 0.0
  %620 = vmatprep.subr.mxu0 0.0
  %621 = vmatpush1.msra.mxu0 0.0
  %622 = vmatprep.subr.mxu0 0.0
  %623 = vmatpush1.msra.mxu0 0.0
  %624 = vmatprep.subr.mxu0 0.0
  %625 = vmatpush1.msra.mxu0 0.0
  %626 = vmatprep.subr.mxu0 0.0
  %627 = vmatpush1.msra.mxu0 0.0
  %628 = vmatprep.subr.mxu0 0.0
  %629 = vmatpush1.msra.mxu0 0.0
  %630 = vmatprep.mubr.f32.mxu0 0.0
  %631 = vmatmul.mubr.f32.gmra.mrb[0].mxu0 %v564
  %v632 = vpop.f32.mrb[0].mxu0
  %v633 = vadd.f32 0.0, %v632
  %v634 = vpop.f32.mrb[0].mxu0
  %635 = vdwg.mxu0
  %v636 = vadd.f32 %v144, %v633
  %v637 = vxor.u32 %v636, 2147483648
  %v638 = vmul.f32 %v637, 1.442695
  %v639 = vpow.pop %v638
  %v640 = vadd.f32 %v639, 1.0
  %v641 = vrcp.pop %v640
  %v642 = vmul.f32 1.0, %v641
  %v643 = vtanh.pop %v636
  %v644 = vmul.f32 %v642, %v554
  %646 = vrot.lane.b32.xlu0 %v643, 64
  %v647 = vpop.permute.xlu0 %646
  %v649 = vmul.f32 %v642, %v647
  %651 = vrot.lane.b32.xlu0 %v649, 32
  %v652 = vpop.permute.xlu0 %651
  %v654 = vadd.f32 %v644, %v652
  %v655 = vtanh.pop %v654
  %657 = vrot.lane.b32.xlu0 %v655, 64
  %v658 = vpop.permute.xlu0 %657
  %v660 = vmul.f32 %v642, %v658
  %662 = vrot.lane.b32.xlu0 %v660, 32
  %v663 = vpop.permute.xlu0 %662
  %v664 = vsel %vm32, %v663, 0
  %666 = vmatprep.subr.mxu0 0.0
  %667 = vmatpush1.msra.mxu0 %v15
  %668 = vmatprep.subr.mxu0 0.0
  %669 = vmatpush1.msra.mxu0 %v16
  %670 = vmatprep.subr.mxu0 0.0
  %671 = vmatpush1.msra.mxu0 %v17
  %672 = vmatprep.subr.mxu0 0.0
  %673 = vmatpush1.msra.mxu0 %v18
  %674 = vmatprep.subr.mxu0 0.0
  %675 = vmatpush1.msra.mxu0 0.0
  %676 = vmatprep.subr.mxu0 0.0
  %677 = vmatpush1.msra.mxu0 0.0
  %678 = vmatprep.subr.mxu0 0.0
  %679 = vmatpush1.msra.mxu0 0.0
  %680 = vmatprep.subr.mxu0 0.0
  %681 = vmatpush1.msra.mxu0 0.0
  %682 = vmatprep.subr.mxu0 0.0
  %683 = vmatpush1.msra.mxu0 0.0
  %684 = vmatprep.subr.mxu0 0.0
  %685 = vmatpush1.msra.mxu0 0.0
  %686 = vmatprep.subr.mxu0 0.0
  %687 = vmatpush1.msra.mxu0 0.0
  %688 = vmatprep.subr.mxu0 0.0
  %689 = vmatpush1.msra.mxu0 0.0
  %690 = vmatprep.subr.mxu0 0.0
  %691 = vmatpush1.msra.mxu0 0.0
  %692 = vmatprep.subr.mxu0 0.0
  %693 = vmatpush1.msra.mxu0 0.0
  %694 = vmatprep.subr.mxu0 0.0
  %695 = vmatpush1.msra.mxu0 0.0
  %696 = vmatprep.subr.mxu0 0.0
  %697 = vmatpush1.msra.mxu0 0.0
  %698 = vmatprep.subr.mxu0 0.0
  %699 = vmatpush1.msra.mxu0 0.0
  %700 = vmatprep.subr.mxu0 0.0
  %701 = vmatpush1.msra.mxu0 0.0
  %702 = vmatprep.subr.mxu0 0.0
  %703 = vmatpush1.msra.mxu0 0.0
  %704 = vmatprep.subr.mxu0 0.0
  %705 = vmatpush1.msra.mxu0 0.0
  %706 = vmatprep.subr.mxu0 0.0
  %707 = vmatpush1.msra.mxu0 0.0
  %708 = vmatprep.subr.mxu0 0.0
  %709 = vmatpush1.msra.mxu0 0.0
  %710 = vmatprep.subr.mxu0 0.0
  %711 = vmatpush1.msra.mxu0 0.0
  %712 = vmatprep.subr.mxu0 0.0
  %713 = vmatpush1.msra.mxu0 0.0
  %714 = vmatprep.subr.mxu0 0.0
  %715 = vmatpush1.msra.mxu0 0.0
  %716 = vmatprep.subr.mxu0 0.0
  %717 = vmatpush1.msra.mxu0 0.0
  %718 = vmatprep.subr.mxu0 0.0
  %719 = vmatpush1.msra.mxu0 0.0
  %720 = vmatprep.subr.mxu0 0.0
  %721 = vmatpush1.msra.mxu0 0.0
  %722 = vmatprep.subr.mxu0 0.0
  %723 = vmatpush1.msra.mxu0 0.0
  %724 = vmatprep.subr.mxu0 0.0
  %725 = vmatpush1.msra.mxu0 0.0
  %726 = vmatprep.subr.mxu0 0.0
  %727 = vmatpush1.msra.mxu0 0.0
  %728 = vmatprep.subr.mxu0 0.0
  %729 = vmatpush1.msra.mxu0 0.0
  %730 = vmatprep.mubr.f32.mxu0 0.0
  %731 = vmatmul.mubr.f32.gmra.mrb[0].mxu0 %v664
  %v732 = vpop.f32.mrb[0].mxu0
  %v733 = vadd.f32 0.0, %v732
  %v734 = vpop.f32.mrb[0].mxu0
  %735 = vdwg.mxu0
  %v736 = vadd.f32 %v149, %v733
  %v737 = vxor.u32 %v736, 2147483648
  %v738 = vmul.f32 %v737, 1.442695
  %v739 = vpow.pop %v738
  %v740 = vadd.f32 %v739, 1.0
  %v741 = vrcp.pop %v740
  %v742 = vmul.f32 1.0, %v741
  %v743 = vtanh.pop %v736
  %v744 = vmul.f32 %v742, %v654
  %746 = vrot.lane.b32.xlu0 %v743, 64
  %v747 = vpop.permute.xlu0 %746
  %v749 = vmul.f32 %v742, %v747
  %751 = vrot.lane.b32.xlu0 %v749, 32
  %v752 = vpop.permute.xlu0 %751
  %v754 = vadd.f32 %v744, %v752
  %v755 = vtanh.pop %v754
  %757 = vrot.lane.b32.xlu0 %v755, 64
  %v758 = vpop.permute.xlu0 %757
  %v760 = vmul.f32 %v742, %v758
  %762 = vrot.lane.b32.xlu0 %v760, 32
  %v763 = vpop.permute.xlu0 %762
  %v764 = vsel %vm32, %v763, 0
  %766 = vmatprep.subr.mxu0 0.0
  %767 = vmatpush1.msra.mxu0 %v15
  %768 = vmatprep.subr.mxu0 0.0
  %769 = vmatpush1.msra.mxu0 %v16
  %770 = vmatprep.subr.mxu0 0.0
  %771 = vmatpush1.msra.mxu0 %v17
  %772 = vmatprep.subr.mxu0 0.0
  %773 = vmatpush1.msra.mxu0 %v18
  %774 = vmatprep.subr.mxu0 0.0
  %775 = vmatpush1.msra.mxu0 0.0
  %776 = vmatprep.subr.mxu0 0.0
  %777 = vmatpush1.msra.mxu0 0.0
  %778 = vmatprep.subr.mxu0 0.0
  %779 = vmatpush1.msra.mxu0 0.0
  %780 = vmatprep.subr.mxu0 0.0
  %781 = vmatpush1.msra.mxu0 0.0
  %782 = vmatprep.subr.mxu0 0.0
  %783 = vmatpush1.msra.mxu0 0.0
  %784 = vmatprep.subr.mxu0 0.0
  %785 = vmatpush1.msra.mxu0 0.0
  %786 = vmatprep.subr.mxu0 0.0
  %787 = vmatpush1.msra.mxu0 0.0
  %788 = vmatprep.subr.mxu0 0.0
  %789 = vmatpush1.msra.mxu0 0.0
  %790 = vmatprep.subr.mxu0 0.0
  %791 = vmatpush1.msra.mxu0 0.0
  %792 = vmatprep.subr.mxu0 0.0
  %793 = vmatpush1.msra.mxu0 0.0
  %794 = vmatprep.subr.mxu0 0.0
  %795 = vmatpush1.msra.mxu0 0.0
  %796 = vmatprep.subr.mxu0 0.0
  %797 = vmatpush1.msra.mxu0 0.0
  %798 = vmatprep.subr.mxu0 0.0
  %799 = vmatpush1.msra.mxu0 0.0
  %800 = vmatprep.subr.mxu0 0.0
  %801 = vmatpush1.msra.mxu0 0.0
  %802 = vmatprep.subr.mxu0 0.0
  %803 = vmatpush1.msra.mxu0 0.0
  %804 = vmatprep.subr.mxu0 0.0
  %805 = vmatpush1.msra.mxu0 0.0
  %806 = vmatprep.subr.mxu0 0.0
  %807 = vmatpush1.msra.mxu0 0.0
  %808 = vmatprep.subr.mxu0 0.0
  %809 = vmatpush1.msra.mxu0 0.0
  %810 = vmatprep.subr.mxu0 0.0
  %811 = vmatpush1.msra.mxu0 0.0
  %812 = vmatprep.subr.mxu0 0.0
  %813 = vmatpush1.msra.mxu0 0.0
  %814 = vmatprep.subr.mxu0 0.0
  %815 = vmatpush1.msra.mxu0 0.0
  %816 = vmatprep.subr.mxu0 0.0
  %817 = vmatpush1.msra.mxu0 0.0
  %818 = vmatprep.subr.mxu0 0.0
  %819 = vmatpush1.msra.mxu0 0.0
  %820 = vmatprep.subr.mxu0 0.0
  %821 = vmatpush1.msra.mxu0 0.0
  %822 = vmatprep.subr.mxu0 0.0
  %823 = vmatpush1.msra.mxu0 0.0
  %824 = vmatprep.subr.mxu0 0.0
  %825 = vmatpush1.msra.mxu0 0.0
  %826 = vmatprep.subr.mxu0 0.0
  %827 = vmatpush1.msra.mxu0 0.0
  %828 = vmatprep.subr.mxu0 0.0
  %829 = vmatpush1.msra.mxu0 0.0
  %830 = vmatprep.mubr.f32.mxu0 0.0
  %831 = vmatmul.mubr.f32.gmra.mrb[0].mxu0 %v764
  %v832 = vpop.f32.mrb[0].mxu0
  %v833 = vadd.f32 0.0, %v832
  %v834 = vpop.f32.mrb[0].mxu0
  %835 = vdwg.mxu0
  %v836 = vadd.f32 %v154, %v833
  %v837 = vxor.u32 %v836, 2147483648
  %v838 = vmul.f32 %v837, 1.442695
  %v839 = vpow.pop %v838
  %v840 = vadd.f32 %v839, 1.0
  %v841 = vrcp.pop %v840
  %v842 = vmul.f32 1.0, %v841
  %v843 = vtanh.pop %v836
  %v844 = vmul.f32 %v842, %v754
  %846 = vrot.lane.b32.xlu0 %v843, 64
  %v847 = vpop.permute.xlu0 %846
  %v849 = vmul.f32 %v842, %v847
  %851 = vrot.lane.b32.xlu0 %v849, 32
  %v852 = vpop.permute.xlu0 %851
  %v854 = vadd.f32 %v844, %v852
  %v855 = vtanh.pop %v854
  %857 = vrot.lane.b32.xlu0 %v855, 64
  %v858 = vpop.permute.xlu0 %857
  %v860 = vmul.f32 %v842, %v858
  %862 = vrot.lane.b32.xlu0 %v860, 32
  %v863 = vpop.permute.xlu0 %862
  %v864 = vsel %vm32, %v863, 0
  %866 = vmatprep.subr.mxu0 0.0
  %867 = vmatpush1.msra.mxu0 %v15
  %868 = vmatprep.subr.mxu0 0.0
  %869 = vmatpush1.msra.mxu0 %v16
  %870 = vmatprep.subr.mxu0 0.0
  %871 = vmatpush1.msra.mxu0 %v17
  %872 = vmatprep.subr.mxu0 0.0
  %873 = vmatpush1.msra.mxu0 %v18
  %874 = vmatprep.subr.mxu0 0.0
  %875 = vmatpush1.msra.mxu0 0.0
  %876 = vmatprep.subr.mxu0 0.0
  %877 = vmatpush1.msra.mxu0 0.0
  %878 = vmatprep.subr.mxu0 0.0
  %879 = vmatpush1.msra.mxu0 0.0
  %880 = vmatprep.subr.mxu0 0.0
  %881 = vmatpush1.msra.mxu0 0.0
  %882 = vmatprep.subr.mxu0 0.0
  %883 = vmatpush1.msra.mxu0 0.0
  %884 = vmatprep.subr.mxu0 0.0
  %885 = vmatpush1.msra.mxu0 0.0
  %886 = vmatprep.subr.mxu0 0.0
  %887 = vmatpush1.msra.mxu0 0.0
  %888 = vmatprep.subr.mxu0 0.0
  %889 = vmatpush1.msra.mxu0 0.0
  %890 = vmatprep.subr.mxu0 0.0
  %891 = vmatpush1.msra.mxu0 0.0
  %892 = vmatprep.subr.mxu0 0.0
  %893 = vmatpush1.msra.mxu0 0.0
  %894 = vmatprep.subr.mxu0 0.0
  %895 = vmatpush1.msra.mxu0 0.0
  %896 = vmatprep.subr.mxu0 0.0
  %897 = vmatpush1.msra.mxu0 0.0
  %898 = vmatprep.subr.mxu0 0.0
  %899 = vmatpush1.msra.mxu0 0.0
  %900 = vmatprep.subr.mxu0 0.0
  %901 = vmatpush1.msra.mxu0 0.0
  %902 = vmatprep.subr.mxu0 0.0
  %903 = vmatpush1.msra.mxu0 0.0
  %904 = vmatprep.subr.mxu0 0.0
  %905 = vmatpush1.msra.mxu0 0.0
  %906 = vmatprep.subr.mxu0 0.0
  %907 = vmatpush1.msra.mxu0 0.0
  %908 = vmatprep.subr.mxu0 0.0
  %909 = vmatpush1.msra.mxu0 0.0
  %910 = vmatprep.subr.mxu0 0.0
  %911 = vmatpush1.msra.mxu0 0.0
  %912 = vmatprep.subr.mxu0 0.0
  %913 = vmatpush1.msra.mxu0 0.0
  %914 = vmatprep.subr.mxu0 0.0
  %915 = vmatpush1.msra.mxu0 0.0
  %916 = vmatprep.subr.mxu0 0.0
  %917 = vmatpush1.msra.mxu0 0.0
  %918 = vmatprep.subr.mxu0 0.0
  %919 = vmatpush1.msra.mxu0 0.0
  %920 = vmatprep.subr.mxu0 0.0
  %921 = vmatpush1.msra.mxu0 0.0
  %922 = vmatprep.subr.mxu0 0.0
  %923 = vmatpush1.msra.mxu0 0.0
  %924 = vmatprep.subr.mxu0 0.0
  %925 = vmatpush1.msra.mxu0 0.0
  %926 = vmatprep.subr.mxu0 0.0
  %927 = vmatpush1.msra.mxu0 0.0
  %928 = vmatprep.subr.mxu0 0.0
  %929 = vmatpush1.msra.mxu0 0.0
  %930 = vmatprep.mubr.f32.mxu0 0.0
  %931 = vmatmul.mubr.f32.gmra.mrb[0].mxu0 %v864
  %v932 = vpop.f32.mrb[0].mxu0
  %v933 = vadd.f32 0.0, %v932
  %v934 = vpop.f32.mrb[0].mxu0
  %935 = vdwg.mxu0
  %v936 = vadd.f32 %v159, %v933
  %v937 = vxor.u32 %v936, 2147483648
  %v938 = vmul.f32 %v937, 1.442695
  %v939 = vpow.pop %v938
  %v940 = vadd.f32 %v939, 1.0
  %v941 = vrcp.pop %v940
  %v942 = vmul.f32 1.0, %v941
  %v943 = vtanh.pop %v936
  %v944 = vmul.f32 %v942, %v854
  %946 = vrot.lane.b32.xlu0 %v943, 64
  %v947 = vpop.permute.xlu0 %946
  %v949 = vmul.f32 %v942, %v947
  %951 = vrot.lane.b32.xlu0 %v949, 32
  %v952 = vpop.permute.xlu0 %951
  %v954 = vadd.f32 %v944, %v952
  %v955 = vtanh.pop %v954
  %957 = vrot.lane.b32.xlu0 %v955, 64
  %v958 = vpop.permute.xlu0 %957
  %v960 = vmul.f32 %v942, %v958
  %v961 = vld [vmem:[%s1 + $0x48] sm:$0x1]
  %v962 = vlaneseq
  %v963 = vshrl.u32 %v962, 7
  %v964 = vsub.s32 0, %v963
  %v965 = vrot.slane %v961, %v964
  %967 = vrot.lane.b32.xlu0 %v965, 96
  %v968 = vpop.permute.xlu0 %967
  %v970 = vmul.f32 %v960, %v968
  %972 = vrot.lane.b32.xlu0 %v970, 32
  %v973 = vpop.permute.xlu0 %972
  %v975 = vsel %vm32, %v973, 0.0
  %976 = vadd.xlane.f32.xlu0 %v975
  %v977 = vpop.xlane.xlu0 %976
  %v978 = vadd.f32 %v977, %v965
  %v979 = vmax.f32 %v978, 0.0
  %v980 = vand.u32 2147483647, %v978
  %v981 = vsub.f32 0.0, %v980
  %v982 = vmul.f32 %v981, 1.442695
  %v983 = vpow.pop %v982
  %v984 = vadd.f32 %v983, 1.0
  %v985 = vlog2.pop %v984
  %v986 = vmul.f32 %v985, 0.6931472
  %v987 = vadd.f32 %v979, %v986
  %v988 = vsub.f32 0.0, %v987
  %v989 = vsub.f32 0.0, %v978
  %v990 = vmax.f32 %v989, 0.0
  %v991 = vand.u32 2147483647, %v989
  %v992 = vsub.f32 0.0, %v991
  %v993 = vmul.f32 %v992, 1.442695
  %v994 = vpow.pop %v993
  %v995 = vadd.f32 %v994, 1.0
  %v996 = vlog2.pop %v995
  %v997 = vmul.f32 %v996, 0.6931472
  %v998 = vadd.f32 %v990, %v997
  %v999 = vsub.f32 0.0, %v998
  %1000 = vst [vmem:[%s2] sm:$0xff] 0.0
  %1002 = vrot.lane.b32.xlu0 %v960, 32
  %v1003 = vpop.permute.xlu0 %1002
  %1005 = vst.msk [vmem:[%s2] sm:$0xff] %vm32, %v1003
  %vm1006 = vcmask 523520
  %1007 = vst.msk [vmem:[%s2] sm:$0xff] %vm1006, %v954
  %1009 = vrot.lane.b32.xlu0 %v988, 32
  %v1010 = vpop.permute.xlu0 %1009
  %vm1012 = vcmask 531968
  %1013 = vst.msk [vmem:[%s2] sm:$0xff] %vm1012, %v1010
  %1015 = vrot.lane.b32.xlu0 %v999, 33
  %v1016 = vpop.permute.xlu0 %1015
  %vm1018 = vcmask 540168
  %1019 = vst.msk [vmem:[%s2] sm:$0xff] %vm1018, %v1016
  // Predicated region
  $region10: #{lstm_classifier_forward.1} parent=0 // pred_check
    _
  $region11: #{lstm_classifier_forward.1} parent=0 // pred_check_branch
    %1021 = sbr.rel (0) target = $region13
  $region12: #{lstm_classifier_forward.1} parent=0 // pred_region
    _
  $region13: #{lstm_classifier_forward.1} parent=0 // pred_fallthru
    _
  // Predicated region
  $region14: #{lstm_classifier_forward.1} parent=0 // pred_check
    _
  $region15: #{lstm_classifier_forward.1} parent=0 // pred_check_branch
    %1023 = sbr.rel (0) target = $region17
  $region16: #{lstm_classifier_forward.1} parent=0 // pred_region
    _
  $region17: #{lstm_classifier_forward.1} parent=0 // pred_fallthru
    _

</llo_original>
